<compile_context>
chip_gen: v5e
topology: v5e:2x2
jax: 0.10.0
libtpu: 0.0.40
codegen_flags: <defaults>
</compile_context>

<pallas_src>
import jax
import jax.numpy as jnp
from jax.experimental import pallas as pl
from jax.experimental.pallas import tpu as pltpu


def _laff_kernel(x_ref, nf_ref, nl_ref, w1_ref, b1_ref, w2_ref, b2_ref, o_ref):
    """One row-tile (a whole number of sequences) per grid step.

    x_ref : (R, C_in)         R = (batch elements per tile) * T
    nf_ref: (R, 1) f32        0.0 on the first row of each sequence, else 1.0
    nl_ref: (R, 1) f32        0.0 on the last  row of each sequence, else 1.0
    w1_ref: (3, C_in, C_mid)  bf16, BN1-folded conv1 taps (k = -1, 0, +1 along seq)
    b1_ref: (1, C_mid)  f32   BN1-folded bias
    w2_ref: (3, C_mid, C_out) bf16, BN2-folded conv2 taps
    b2_ref: (1, C_out)  f32
    o_ref : (R, C_out)
    """
    R = x_ref.shape[0]
    f32 = jnp.float32
    bf16 = jnp.bfloat16

    nf = nf_ref[...]                      # (R, 1) f32
    nl = nl_ref[...]                      # (R, 1) f32

    # Shifted row copies via XLU rolls (pltpu.roll follows jnp.roll semantics:
    # roll(x, 1, axis=0)[t] == x[t-1]).  The 0/1 masks zero the rows that
    # correspond to the conv's zero padding at each sequence boundary (this also
    # kills the roll's wrap-around rows).  Rolls/masks stay in f32.
    x = x_ref[...].astype(f32)            # (R, C_in)
    x_prev = pltpu.roll(x, shift=1, axis=0) * nf        # row t <- x[t-1]
    x_next = pltpu.roll(x, shift=R - 1, axis=0) * nl    # row t <- x[t+1]

    # conv1 + bn1 (folded) + relu: three aligned bf16 MXU matmuls, f32 accumulate.
    h = (jnp.dot(x_prev.astype(bf16), w1_ref[0], preferred_element_type=f32)
         + jnp.dot(x.astype(bf16), w1_ref[1], preferred_element_type=f32)
         + jnp.dot(x_next.astype(bf16), w1_ref[2], preferred_element_type=f32)
         + b1_ref[...])
    h = jnp.maximum(h, 0.0)               # (R, C_mid) f32

    # conv2 zero-pads the *activation* h at sequence boundaries (PyTorch
    # padding=1 on conv2's input); the same masks produce exactly that.
    h_prev = pltpu.roll(h, shift=1, axis=0) * nf
    h_next = pltpu.roll(h, shift=R - 1, axis=0) * nl

    out = (jnp.dot(h_prev.astype(bf16), w2_ref[0], preferred_element_type=f32)
           + jnp.dot(h.astype(bf16), w2_ref[1], preferred_element_type=f32)
           + jnp.dot(h_next.astype(bf16), w2_ref[2], preferred_element_type=f32)
           + b2_ref[...])
    o_ref[...] = jnp.maximum(out, 0.0).astype(o_ref.dtype)


def locality_aware_feed_forward(x, w1, b1, bn1, w2, b2, bn2, *, eps=1e-5):
    """x: (B, T, C_in).  w1/w2 in PyTorch OIHW layout (C_out, C_in, 3, 3).
    b1/b2: conv biases.  bn1/bn2: (gamma, beta, running_mean, running_var).
    Returns (B, T, C_out), same dtype as x.  Eval-mode BatchNorm semantics.
    """
    B, T, C_in = x.shape
    C_mid = w1.shape[0]
    C_out = w2.shape[0]
    M = B * T

    def fold(w, b, bn):
        gamma, beta, mean, var = bn
        scale = gamma / jnp.sqrt(var + eps)                  # (C,)
        # Only the center-width column of the 3x3 kernel touches real data
        # (input width is 1, padding is 1).
        wc = jnp.transpose(w[:, :, :, 1], (2, 1, 0))         # (3, C_in_layer, C)
        wf = (wc * scale[None, None, :]).astype(jnp.bfloat16)
        bf_ = (scale * (b - mean) + beta).reshape(1, -1).astype(jnp.float32)
        return wf, bf_

    w1f, b1f = fold(w1, b1, bn1)
    w2f, b2f = fold(w2, b2, bn2)

    # Tile the flattened (B*T) rows; tiles always cover whole sequences so the
    # conv taps never cross a tile boundary.  Fold several batch elements per
    # tile so the matmul M dimension is well filled even for short sequences.
    bb = max(1, min(B, 512 // max(T, 1)))
    while bb > 1 and B % bb != 0:
        bb -= 1
    R = bb * T
    if bb < B and R % 8 != 0:
        # Sub-array blocks need a sublane multiple of 8; fall back to one tile
        # (full-dim blocks are always legal).
        bb, R = B, M
    n_tiles = M // R

    x2 = x.reshape(M, C_in)                                  # free reshape

    # Per-row 0/1 masks marking the first/last row of each sequence (realize the
    # conv zero padding after the rolls); tiny (M,1) f32 inputs.
    pos = jnp.arange(M, dtype=jnp.int32) % T
    not_first = (pos != 0).astype(jnp.float32)[:, None]
    not_last = (pos != (T - 1)).astype(jnp.float32)[:, None]

    xb = jnp.dtype(x.dtype).itemsize
    # VMEM budget (~2x headroom): single-buffered bf16 weights + double-buffered
    # x/out tiles + in-kernel temporaries.  Capped at 56 MiB so it stays under
    # v7x's 64 MiB/core (v5e/v6e have 128 MiB physical).
    weight_bytes = (3 * C_in * C_mid + 3 * C_mid * C_out) * 2 + (C_mid + C_out) * 4
    io_bytes = 2 * R * (C_in + C_out) * xb + 4 * R * 4
    tmp_bytes = R * (C_in * (3 * 4 + 3 * 2) + C_mid * (4 * 4 + 3 * 2) + C_out * 2 * 4)
    vmem_limit = int(min(56 * 2 ** 20,
                         max(16 * 2 ** 20, 2 * (weight_bytes + io_bytes + tmp_bytes))))

    flops = 2 * M * 3 * C_mid * (C_in + C_out)
    bytes_accessed = M * C_in * xb + M * C_out * xb + 2 * M * 4 + weight_bytes

    out = pl.pallas_call(
        _laff_kernel,
        out_shape=jax.ShapeDtypeStruct((M, C_out), x.dtype),
        grid_spec=pltpu.PrefetchScalarGridSpec(
            num_scalar_prefetch=0,
            grid=(n_tiles,),
            in_specs=[
                pl.BlockSpec((R, C_in), lambda i: (i, 0)),
                pl.BlockSpec((R, 1), lambda i: (i, 0)),
                pl.BlockSpec((R, 1), lambda i: (i, 0)),
                # Grid-invariant weights/biases: single-buffered (no 2x VMEM).
                pl.BlockSpec((3, C_in, C_mid), lambda i: (0, 0, 0),
                             pipeline_mode=pl.Buffered(1)),
                pl.BlockSpec((1, C_mid), lambda i: (0, 0),
                             pipeline_mode=pl.Buffered(1)),
                pl.BlockSpec((3, C_mid, C_out), lambda i: (0, 0, 0),
                             pipeline_mode=pl.Buffered(1)),
                pl.BlockSpec((1, C_out), lambda i: (0, 0),
                             pipeline_mode=pl.Buffered(1)),
            ],
            out_specs=pl.BlockSpec((R, C_out), lambda i: (i, 0)),
        ),
        compiler_params=pltpu.CompilerParams(
            # Row tiles are independent -> shard across TensorCores.
            dimension_semantics=("parallel",),
            vmem_limit_bytes=vmem_limit,
        ),
        cost_estimate=pl.CostEstimate(
            flops=int(flops),
            transcendentals=0,
            bytes_accessed=int(bytes_accessed),
        ),
    )(x2, not_first, not_last, w1f, b1f, w2f, b2f)

    return out.reshape(B, T, C_out)


def _reference(x, w1, b1, bn1, w2, b2, bn2, eps):
    """Pure-JAX mirror of the PyTorch forward (eval-mode BN), via real 2-D convs."""
    hp = jax.lax.Precision.HIGHEST

    def bn_apply(y, bn):
        gamma, beta, mean, var = bn
        return (gamma[None, :, None, None] * (y - mean[None, :, None, None])
                / jnp.sqrt(var[None, :, None, None] + eps)
                + beta[None, :, None, None])

    xp = jnp.transpose(x, (0, 2, 1))[..., None]               # (B, C_in, T, 1)
    y = jax.lax.conv_general_dilated(
        xp, w1, window_strides=(1, 1), padding=((1, 1), (1, 1)),
        dimension_numbers=("NCHW", "OIHW", "NCHW"), precision=hp)
    y = y + b1[None, :, None, None]
    y = jnp.maximum(bn_apply(y, bn1), 0.0)
    y = jax.lax.conv_general_dilated(
        y, w2, window_strides=(1, 1), padding=((1, 1), (1, 1)),
        dimension_numbers=("NCHW", "OIHW", "NCHW"), precision=hp)
    y = y + b2[None, :, None, None]
    y = jnp.maximum(bn_apply(y, bn2), 0.0)
    return jnp.transpose(y[..., 0], (0, 2, 1))                # (B, T, C_out)


if __name__ == "__main__":
    batch, seq = 2, 8
    in_channels, inter_channels, out_channels = 32, 64, 32
    eps = 1e-5  # nn.BatchNorm2d default

    key = jax.random.PRNGKey(0)
    keys = jax.random.split(key, 12)

    x = jax.random.normal(keys[0], (batch, seq, in_channels), dtype=jnp.float32)

    w1 = 0.1 * jax.random.normal(keys[1], (inter_channels, in_channels, 3, 3), jnp.float32)
    b1 = 0.1 * jax.random.normal(keys[2], (inter_channels,), jnp.float32)
    bn1 = (jax.random.uniform(keys[3], (inter_channels,), jnp.float32, 0.5, 1.5),   # gamma
           0.1 * jax.random.normal(keys[4], (inter_channels,), jnp.float32),        # beta
           0.1 * jax.random.normal(keys[5], (inter_channels,), jnp.float32),        # running_mean
           jax.random.uniform(keys[6], (inter_channels,), jnp.float32, 0.5, 1.5))   # running_var

    w2 = 0.1 * jax.random.normal(keys[7], (out_channels, inter_channels, 3, 3), jnp.float32)
    b2 = 0.1 * jax.random.normal(keys[8], (out_channels,), jnp.float32)
    bn2 = (jax.random.uniform(keys[9], (out_channels,), jnp.float32, 0.5, 1.5),
           0.1 * jax.random.normal(keys[10], (out_channels,), jnp.float32),
           0.1 * jax.random.normal(keys[11], (out_channels,), jnp.float32),
           jax.random.uniform(keys[3], (out_channels,), jnp.float32, 0.5, 1.5))

    out = locality_aware_feed_forward(x, w1, b1, bn1, w2, b2, bn2, eps=eps)
    out = jax.block_until_ready(out)

    ref = _reference(x, w1, b1, bn1, w2, b2, bn2, eps)
    ref = jax.block_until_ready(ref)

    assert out.shape == (batch, seq, out_channels), f"bad shape {out.shape}"
    # Tolerance allows bf16-operand MXU matmuls (f32 accumulation) vs HIGHEST-
    # precision f32 XLA convs; any structural/shift/BN-folding bug would be O(1).
    assert jnp.allclose(out, ref, atol=5e-2, rtol=5e-2), (
        f"mismatch vs reference, max abs diff {jnp.max(jnp.abs(out - ref))}")

    print("KERNEL_OK")
</pallas_src>

<mosaic_0001>
module attributes {stable_mosaic.version = 11 : i64} {
  func.func @_laff_kernel(%arg0: i32, %arg1: memref<16x32xf32, #tpu.memory_space<vmem>>, %arg2: memref<16x1xf32, #tpu.memory_space<vmem>>, %arg3: memref<16x1xf32, #tpu.memory_space<vmem>>, %arg4: memref<3x32x64xbf16, #tpu.memory_space<vmem>>, %arg5: memref<1x64xf32, #tpu.memory_space<vmem>>, %arg6: memref<3x64x32xbf16, #tpu.memory_space<vmem>>, %arg7: memref<1x32xf32, #tpu.memory_space<vmem>>, %arg8: memref<16x32xf32, #tpu.memory_space<vmem>>) attributes {dimension_semantics = [#tpu.dimension_semantics<parallel>], iteration_bounds = array<i64: 1>, scalar_prefetch = 0 : i64, scratch_operands = 0 : i64, tpu.core_type = #tpu.core_type<tc>, window_params = [{transform_indices = @transform_0, window_bounds = array<i64: 16, 32>}, {transform_indices = @transform_1, window_bounds = array<i64: 16, 1>}, {transform_indices = @transform_2, window_bounds = array<i64: 16, 1>}, {pipeline_mode = #tpu.pipeline_mode<synchronous>, transform_indices = @transform_3, window_bounds = array<i64: 3, 32, 64>}, {pipeline_mode = #tpu.pipeline_mode<synchronous>, transform_indices = @transform_4, window_bounds = array<i64: 1, 64>}, {pipeline_mode = #tpu.pipeline_mode<synchronous>, transform_indices = @transform_5, window_bounds = array<i64: 3, 64, 32>}, {pipeline_mode = #tpu.pipeline_mode<synchronous>, transform_indices = @transform_6, window_bounds = array<i64: 1, 32>}, {transform_indices = @transform_7, window_bounds = array<i64: 16, 32>}]} {
    %c0 = arith.constant 0 : index
    %c0_0 = arith.constant 0 : index
    %0 = vector.load %arg2[%c0, %c0_0] : memref<16x1xf32, #tpu.memory_space<vmem>>, vector<16x1xf32>
    %c0_1 = arith.constant 0 : index
    %c0_2 = arith.constant 0 : index
    %1 = vector.load %arg3[%c0_1, %c0_2] : memref<16x1xf32, #tpu.memory_space<vmem>>, vector<16x1xf32>
    %c0_3 = arith.constant 0 : index
    %c0_4 = arith.constant 0 : index
    %2 = vector.load %arg1[%c0_3, %c0_4] : memref<16x32xf32, #tpu.memory_space<vmem>>, vector<16x32xf32>
    %c1_i32 = arith.constant 1 : i32
    %3 = tpu.dynamic_rotate %2 by %c1_i32 dim 0 : vector<16x32xf32>, i32 -> vector<16x32xf32>
    %4 = vector.broadcast %0 : vector<16x1xf32> to vector<16x32xf32>
    %5 = arith.mulf %3, %4 : vector<16x32xf32>
    %c15_i32 = arith.constant 15 : i32
    %6 = tpu.dynamic_rotate %2 by %c15_i32 dim 0 : vector<16x32xf32>, i32 -> vector<16x32xf32>
    %7 = vector.broadcast %1 : vector<16x1xf32> to vector<16x32xf32>
    %8 = arith.mulf %6, %7 : vector<16x32xf32>
    %9 = arith.truncf %5 : vector<16x32xf32> to vector<16x32xbf16>
    %c0_5 = arith.constant 0 : index
    %c0_6 = arith.constant 0 : index
    %c0_7 = arith.constant 0 : index
    %10 = vector.load %arg4[%c0_5, %c0_6, %c0_7] : memref<3x32x64xbf16, #tpu.memory_space<vmem>>, vector<1x32x64xbf16>
    %11 = vector.shape_cast %10 : vector<1x32x64xbf16> to vector<32x64xbf16>
    %cst = arith.constant dense<0.000000e+00> : vector<16x64xf32>
    %12 = tpu.matmul %9, %11, %cst {dimension_numbers = #tpu.dot_dimension_numbers<[1], [0], [0], [1], [0, 0, 1, 1], [], []>} : vector<16x32xbf16>, vector<32x64xbf16>, vector<16x64xf32> -> vector<16x64xf32>
    %13 = arith.truncf %2 : vector<16x32xf32> to vector<16x32xbf16>
    %c1 = arith.constant 1 : index
    %c0_8 = arith.constant 0 : index
    %c0_9 = arith.constant 0 : index
    %14 = vector.load %arg4[%c1, %c0_8, %c0_9] : memref<3x32x64xbf16, #tpu.memory_space<vmem>>, vector<1x32x64xbf16>
    %15 = vector.shape_cast %14 : vector<1x32x64xbf16> to vector<32x64xbf16>
    %cst_10 = arith.constant dense<0.000000e+00> : vector<16x64xf32>
    %16 = tpu.matmul %13, %15, %cst_10 {dimension_numbers = #tpu.dot_dimension_numbers<[1], [0], [0], [1], [0, 0, 1, 1], [], []>} : vector<16x32xbf16>, vector<32x64xbf16>, vector<16x64xf32> -> vector<16x64xf32>
    %17 = arith.addf %12, %16 : vector<16x64xf32>
    %18 = arith.truncf %8 : vector<16x32xf32> to vector<16x32xbf16>
    %c2 = arith.constant 2 : index
    %c0_11 = arith.constant 0 : index
    %c0_12 = arith.constant 0 : index
    %19 = vector.load %arg4[%c2, %c0_11, %c0_12] : memref<3x32x64xbf16, #tpu.memory_space<vmem>>, vector<1x32x64xbf16>
    %20 = vector.shape_cast %19 : vector<1x32x64xbf16> to vector<32x64xbf16>
    %cst_13 = arith.constant dense<0.000000e+00> : vector<16x64xf32>
    %21 = tpu.matmul %18, %20, %cst_13 {dimension_numbers = #tpu.dot_dimension_numbers<[1], [0], [0], [1], [0, 0, 1, 1], [], []>} : vector<16x32xbf16>, vector<32x64xbf16>, vector<16x64xf32> -> vector<16x64xf32>
    %22 = arith.addf %17, %21 : vector<16x64xf32>
    %c0_14 = arith.constant 0 : index
    %c0_15 = arith.constant 0 : index
    %23 = vector.load %arg5[%c0_14, %c0_15] : memref<1x64xf32, #tpu.memory_space<vmem>>, vector<1x64xf32>
    %24 = vector.broadcast %23 : vector<1x64xf32> to vector<16x64xf32>
    %25 = arith.addf %22, %24 : vector<16x64xf32>
    %cst_16 = arith.constant 0.000000e+00 : f32
    %26 = vector.broadcast %cst_16 : f32 to vector<16x64xf32>
    %27 = arith.maximumf %25, %26 : vector<16x64xf32>
    %c1_i32_17 = arith.constant 1 : i32
    %28 = tpu.dynamic_rotate %27 by %c1_i32_17 dim 0 : vector<16x64xf32>, i32 -> vector<16x64xf32>
    %29 = vector.broadcast %0 : vector<16x1xf32> to vector<16x64xf32>
    %30 = arith.mulf %28, %29 : vector<16x64xf32>
    %c15_i32_18 = arith.constant 15 : i32
    %31 = tpu.dynamic_rotate %27 by %c15_i32_18 dim 0 : vector<16x64xf32>, i32 -> vector<16x64xf32>
    %32 = vector.broadcast %1 : vector<16x1xf32> to vector<16x64xf32>
    %33 = arith.mulf %31, %32 : vector<16x64xf32>
    %34 = arith.truncf %30 : vector<16x64xf32> to vector<16x64xbf16>
    %c0_19 = arith.constant 0 : index
    %c0_20 = arith.constant 0 : index
    %c0_21 = arith.constant 0 : index
    %35 = vector.load %arg6[%c0_19, %c0_20, %c0_21] : memref<3x64x32xbf16, #tpu.memory_space<vmem>>, vector<1x64x32xbf16>
    %36 = vector.shape_cast %35 : vector<1x64x32xbf16> to vector<64x32xbf16>
    %cst_22 = arith.constant dense<0.000000e+00> : vector<16x32xf32>
    %37 = tpu.matmul %34, %36, %cst_22 {dimension_numbers = #tpu.dot_dimension_numbers<[1], [0], [0], [1], [0, 0, 1, 1], [], []>} : vector<16x64xbf16>, vector<64x32xbf16>, vector<16x32xf32> -> vector<16x32xf32>
    %38 = arith.truncf %27 : vector<16x64xf32> to vector<16x64xbf16>
    %c1_23 = arith.constant 1 : index
    %c0_24 = arith.constant 0 : index
    %c0_25 = arith.constant 0 : index
    %39 = vector.load %arg6[%c1_23, %c0_24, %c0_25] : memref<3x64x32xbf16, #tpu.memory_space<vmem>>, vector<1x64x32xbf16>
    %40 = vector.shape_cast %39 : vector<1x64x32xbf16> to vector<64x32xbf16>
    %cst_26 = arith.constant dense<0.000000e+00> : vector<16x32xf32>
    %41 = tpu.matmul %38, %40, %cst_26 {dimension_numbers = #tpu.dot_dimension_numbers<[1], [0], [0], [1], [0, 0, 1, 1], [], []>} : vector<16x64xbf16>, vector<64x32xbf16>, vector<16x32xf32> -> vector<16x32xf32>
    %42 = arith.addf %37, %41 : vector<16x32xf32>
    %43 = arith.truncf %33 : vector<16x64xf32> to vector<16x64xbf16>
    %c2_27 = arith.constant 2 : index
    %c0_28 = arith.constant 0 : index
    %c0_29 = arith.constant 0 : index
    %44 = vector.load %arg6[%c2_27, %c0_28, %c0_29] : memref<3x64x32xbf16, #tpu.memory_space<vmem>>, vector<1x64x32xbf16>
    %45 = vector.shape_cast %44 : vector<1x64x32xbf16> to vector<64x32xbf16>
    %cst_30 = arith.constant dense<0.000000e+00> : vector<16x32xf32>
    %46 = tpu.matmul %43, %45, %cst_30 {dimension_numbers = #tpu.dot_dimension_numbers<[1], [0], [0], [1], [0, 0, 1, 1], [], []>} : vector<16x64xbf16>, vector<64x32xbf16>, vector<16x32xf32> -> vector<16x32xf32>
    %47 = arith.addf %42, %46 : vector<16x32xf32>
    %c0_31 = arith.constant 0 : index
    %c0_32 = arith.constant 0 : index
    %48 = vector.load %arg7[%c0_31, %c0_32] : memref<1x32xf32, #tpu.memory_space<vmem>>, vector<1x32xf32>
    %49 = vector.broadcast %48 : vector<1x32xf32> to vector<16x32xf32>
    %50 = arith.addf %47, %49 : vector<16x32xf32>
    %cst_33 = arith.constant 0.000000e+00 : f32
    %51 = vector.broadcast %cst_33 : f32 to vector<16x32xf32>
    %52 = arith.maximumf %50, %51 : vector<16x32xf32>
    %c0_34 = arith.constant 0 : index
    %c0_35 = arith.constant 0 : index
    %53 = vector.load %arg8[%c0_34, %c0_35] : memref<16x32xf32, #tpu.memory_space<vmem>>, vector<16x32xf32>
    tpu.vector_store %arg8[%c0_34, %c0_35], %52 {strides = array<i32>} : memref<16x32xf32, #tpu.memory_space<vmem>>, vector<16x32xf32>,
    return
  }
  func.func @transform_0(%arg0: i32) -> (i32, i32) {
    %c0_i32 = arith.constant 0 : i32
    %c0_i32_0 = arith.constant 0 : i32
    return %arg0, %c0_i32 : i32, i32
  }
  func.func @transform_1(%arg0: i32) -> (i32, i32) {
    %c0_i32 = arith.constant 0 : i32
    %c0_i32_0 = arith.constant 0 : i32
    return %arg0, %c0_i32 : i32, i32
  }
  func.func @transform_2(%arg0: i32) -> (i32, i32) {
    %c0_i32 = arith.constant 0 : i32
    %c0_i32_0 = arith.constant 0 : i32
    return %arg0, %c0_i32 : i32, i32
  }
  func.func @transform_3(%arg0: i32) -> (i32, i32, i32) {
    %c0_i32 = arith.constant 0 : i32
    %c0_i32_0 = arith.constant 0 : i32
    %c0_i32_1 = arith.constant 0 : i32
    %c0_i32_2 = arith.constant 0 : i32
    return %c0_i32, %c0_i32_0, %c0_i32_1 : i32, i32, i32
  }
  func.func @transform_4(%arg0: i32) -> (i32, i32) {
    %c0_i32 = arith.constant 0 : i32
    %c0_i32_0 = arith.constant 0 : i32
    %c0_i32_1 = arith.constant 0 : i32
    return %c0_i32, %c0_i32_0 : i32, i32
  }
  func.func @transform_5(%arg0: i32) -> (i32, i32, i32) {
    %c0_i32 = arith.constant 0 : i32
    %c0_i32_0 = arith.constant 0 : i32
    %c0_i32_1 = arith.constant 0 : i32
    %c0_i32_2 = arith.constant 0 : i32
    return %c0_i32, %c0_i32_0, %c0_i32_1 : i32, i32, i32
  }
  func.func @transform_6(%arg0: i32) -> (i32, i32) {
    %c0_i32 = arith.constant 0 : i32
    %c0_i32_0 = arith.constant 0 : i32
    %c0_i32_1 = arith.constant 0 : i32
    return %c0_i32, %c0_i32_0 : i32, i32
  }
  func.func @transform_7(%arg0: i32) -> (i32, i32) {
    %c0_i32 = arith.constant 0 : i32
    %c0_i32_0 = arith.constant 0 : i32
    return %arg0, %c0_i32 : i32, i32
  }
}

</mosaic_0001>

<llo_original>
// kernel: tpu_custom_call.1
$region0: #{tpu_custom_call.1}
  #allocation0 [shape = 'u32[]', space=smem, size = 0x4, offset = 0x4, fixed_abs, tag = 'smem constant byte address 0x4 - core index']
  #allocation1 [shape = 'u32[72,128]{1,0:T(1,128)}', space=vmem, size = 0x9000, scoped, tag = 'internal scratch']
  %s0 = inlined_call_operand.vmem [shape: f32[16,32], index: 0, kind: input, shape index: {}]
  %s1 = inlined_call_operand.vmem [shape: f32[16,1], index: 1, kind: input, shape index: {}]
  %s2 = inlined_call_operand.vmem [shape: f32[16,1], index: 2, kind: input, shape index: {}]
  %s3 = inlined_call_operand.vmem [shape: bf16[3,32,64], index: 3, kind: input, shape index: {}]
  %s4 = inlined_call_operand.vmem [shape: f32[1,64], index: 4, kind: input, shape index: {}]
  %s5 = inlined_call_operand.vmem [shape: bf16[3,64,32], index: 5, kind: input, shape index: {}]
  %s6 = inlined_call_operand.vmem [shape: f32[1,32], index: 6, kind: input, shape index: {}]
  %s7 = inlined_call_operand.hbm [shape: f32[16,32], index: 7, kind: output, shape index: {}]
  %s8 = sld [smem:[#allocation0]]
  $region38: #{tpu_custom_call.1} parent=0
    _
  %s10 = ssub.s32 1, %s8
  %s11 = scalar_select 0, %s10, %s8
  $region1: #{tpu_custom_call.1} parent=0
    #allocation2 [shape = 'u8[8192]{0}', space=vmem, size = 0x2000, scoped, tag = 'output window, operand 0, single buffered']
    #allocation3 [shape = 's32[1]{0}', space=sflag, size = 0x4, scoped, tag = 'scoped memory for tpu_custom_call.1']
    %12 = vsyncpa [#allocation3], 0
    // Predicated region
    $region2: #{tpu_custom_call.1} parent=1 // pred_check
      _
    $region3: #{tpu_custom_call.1} parent=1 // pred_check_branch
      %14 = sbr.rel (0) target = $region5
    $region4: #{tpu_custom_call.1} parent=1 // pred_region
      _
    $region5: #{tpu_custom_call.1} parent=1 // pred_fallthru
      _
    // Predicated region
    $region6: #{tpu_custom_call.1} parent=1 // pred_check
      _
    $region7: #{tpu_custom_call.1} parent=1 // pred_check_branch
      %16 = sbr.rel (0) target = $region9
    $region8: #{tpu_custom_call.1} parent=1 // pred_region
      _
    $region9: #{tpu_custom_call.1} parent=1 // pred_fallthru
      _
    // Predicated region
    $region10: #{tpu_custom_call.1} parent=1 // pred_check
      _
    $region11: #{tpu_custom_call.1} parent=1 // pred_check_branch
      %18 = sbr.rel (0) target = $region13
    $region12: #{tpu_custom_call.1} parent=1 // pred_region
      _
    $region13: #{tpu_custom_call.1} parent=1 // pred_fallthru
      _
    // Predicated region
    $region14: #{tpu_custom_call.1} parent=1 // pred_check
      _
    $region15: #{tpu_custom_call.1} parent=1 // pred_check_branch
      %20 = sbr.rel (0) target = $region17
    $region16: #{tpu_custom_call.1} parent=1 // pred_region
      _
    $region17: #{tpu_custom_call.1} parent=1 // pred_fallthru
      _
    // Predicated region
    $region18: #{tpu_custom_call.1} parent=1 // pred_check
      _
    $region19: #{tpu_custom_call.1} parent=1 // pred_check_branch
      %22 = sbr.rel (0) target = $region21
    $region20: #{tpu_custom_call.1} parent=1 // pred_region
      _
    $region21: #{tpu_custom_call.1} parent=1 // pred_fallthru
      _
    // Predicated region
    $region22: #{tpu_custom_call.1} parent=1 // pred_check
      _
    $region23: #{tpu_custom_call.1} parent=1 // pred_check_branch
      %24 = sbr.rel (0) target = $region25
    $region24: #{tpu_custom_call.1} parent=1 // pred_region
      _
    $region25: #{tpu_custom_call.1} parent=1 // pred_fallthru
      _
    // Predicated region
    $region26: #{tpu_custom_call.1} parent=1 // pred_check
      _
    $region27: #{tpu_custom_call.1} parent=1 // pred_check_branch
      %26 = sbr.rel (0) target = $region29
    $region28: #{tpu_custom_call.1} parent=1 // pred_region
      _
    $region29: #{tpu_custom_call.1} parent=1 // pred_fallthru
      _
    %v28 = vld [vmem:[%s1] sm:$0xff]
    %v29 = vld [vmem:[%s1 + $0x8] sm:$0xff]
    %v30 = vld [vmem:[%s2] sm:$0xff]
    %v31 = vld [vmem:[%s2 + $0x8] sm:$0xff]
    %v32 = vld [vmem:[%s0] sm:$0xff]
    %v33 = vld [vmem:[%s0 + $0x8] sm:$0xff]
    %v34 = vrot.slane %v32, 7
    %v35 = vrot.slane %v33, 7
    %v36 = vlaneseq
    %v37 = vshrl.u32 %v36, 7
    %vm38 = vcmp.lt.s32.totalorder %v37, 1
    %v39 = vsel %vm38, %v34, %v35
    %v40 = vsel %vm38, %v35, %v34
    %42 = vset.pattern.permute.xlu0 0
    %43 = vperm.xlu0 %42, %v28
    %v44 = vpop.permute.xlu0 %43
    %47 = vset.pattern.permute.xlu0 0
    %48 = vperm.xlu0 %47, %v29
    %v49 = vpop.permute.xlu0 %48
    %v51 = vmul.f32 %v40, %v44
    %v52 = vmul.f32 %v39, %v49
    %v53 = vrot.slane %v32, 1
    %v54 = vrot.slane %v33, 1
    %vm55 = vcmp.lt.s32.totalorder %v37, 7
    %v56 = vsel %vm55, %v53, %v54
    %v57 = vsel %vm55, %v54, %v53
    %59 = vset.pattern.permute.xlu0 0
    %60 = vperm.xlu0 %59, %v30
    %v61 = vpop.permute.xlu0 %60
    %64 = vset.pattern.permute.xlu0 0
    %65 = vperm.xlu0 %64, %v31
    %v66 = vpop.permute.xlu0 %65
    %v68 = vmul.f32 %v56, %v61
    %v69 = vmul.f32 %v57, %v66
    %v70 = vpack.c.bf16 %v52, %v51
    %v71 = vld [vmem:[%s3] sm:$0xf]
    %v72 = vld [vmem:[%s3 + $0x4] sm:$0xf]
    %v73 = vld [vmem:[%s3 + $0x8] sm:$0xf]
    %v74 = vld [vmem:[%s3 + $0xc] sm:$0xf]
    %v75 = vpack.c.bf16 %v33, %v32
    %s76 = scalar_lea.vmem %s3, 16
    %v77 = vld [vmem:[%s76] sm:$0xf]
    %v78 = vld [vmem:[%s76 + $0x4] sm:$0xf]
    %v79 = vld [vmem:[%s76 + $0x8] sm:$0xf]
    %v80 = vld [vmem:[%s76 + $0xc] sm:$0xf]
    %v85 = vunpack.c.l.b16 %v77
    %v86 = vunpack.c.l.b16 %v78
    %v87 = vunpack.c.l.b16 %v79
    %v88 = vunpack.c.l.b16 %v80
    %v89 = vpack.c.b16 %v86, %v85
    %v90 = vpack.c.b16 %v88, %v87
    %vm93 = vcmask 261120
    %v95 = vsel %vm93, %v75, 0
    %97 = vmatpush.bf16.msra.mxu0 0
    %98 = vmatpush.bf16.msra.mxu0 0
    %99 = vmatpush.bf16.msra.mxu0 0
    %100 = vmatpush.bf16.msra.mxu0 0
    %101 = vmatpush.bf16.msra.mxu0 0
    %102 = vmatpush.bf16.msra.mxu0 0
    %103 = vmatpush.bf16.msra.mxu0 %v90
    %104 = vmatpush.bf16.msra.mxu0 %v89
    %105 = vmatmul.bf16.gmra.mxu0 %v95
    %v106 = vpop.f32.mrf.mxu0
    %v107 = vadd.f32 0.0, %v106
    %v108 = vpop.f32.mrf.mxu0
    %v109 = vadd.f32 0.0, %v108
    %110 = vdwg.mxu0
    %v115 = vunpack.c.l.b16 %v71
    %v116 = vunpack.c.l.b16 %v72
    %v117 = vunpack.c.l.b16 %v73
    %v118 = vunpack.c.l.b16 %v74
    %v119 = vpack.c.b16 %v116, %v115
    %v120 = vpack.c.b16 %v118, %v117
    %v124 = vsel %vm93, %v70, 0
    %126 = vmatpush.bf16.msra.mxu0 0
    %127 = vmatpush.bf16.msra.mxu0 0
    %128 = vmatpush.bf16.msra.mxu0 0
    %129 = vmatpush.bf16.msra.mxu0 0
    %130 = vmatpush.bf16.msra.mxu0 0
    %131 = vmatpush.bf16.msra.mxu0 0
    %132 = vmatpush.bf16.msra.mxu0 %v120
    %133 = vmatpush.bf16.msra.mxu0 %v119
    %134 = vmatmul.bf16.gmra.mxu0 %v124
    %v135 = vpop.f32.mrf.mxu0
    %v136 = vadd.f32 %v107, %v135
    %v137 = vpop.f32.mrf.mxu0
    %v138 = vadd.f32 %v109, %v137
    %139 = vdwg.mxu0
    %v140 = vpack.c.bf16 %v69, %v68
    %s141 = scalar_lea.vmem %s3, 32
    %v142 = vld [vmem:[%s141] sm:$0xf]
    %v143 = vld [vmem:[%s141 + $0x4] sm:$0xf]
    %v144 = vld [vmem:[%s141 + $0x8] sm:$0xf]
    %v145 = vld [vmem:[%s141 + $0xc] sm:$0xf]
    %v150 = vunpack.c.l.b16 %v142
    %v151 = vunpack.c.l.b16 %v143
    %v152 = vunpack.c.l.b16 %v144
    %v153 = vunpack.c.l.b16 %v145
    %v154 = vpack.c.b16 %v151, %v150
    %v155 = vpack.c.b16 %v153, %v152
    %v159 = vsel %vm93, %v140, 0
    %161 = vmatpush.bf16.msra.mxu0 0
    %162 = vmatpush.bf16.msra.mxu0 0
    %163 = vmatpush.bf16.msra.mxu0 0
    %164 = vmatpush.bf16.msra.mxu0 0
    %165 = vmatpush.bf16.msra.mxu0 0
    %166 = vmatpush.bf16.msra.mxu0 0
    %167 = vmatpush.bf16.msra.mxu0 %v155
    %168 = vmatpush.bf16.msra.mxu0 %v154
    %169 = vmatmul.bf16.gmra.mxu0 %v159
    %v170 = vpop.f32.mrf.mxu0
    %v171 = vadd.f32 0.0, %v170
    %v172 = vpop.f32.mrf.mxu0
    %v173 = vadd.f32 0.0, %v172
    %174 = vdwg.mxu0
    %v175 = vadd.f32 %v136, %v171
    %v176 = vadd.f32 %v138, %v173
    %v177 = vld [vmem:[%s4] sm:$0x1]
    %v179 = vperm.slane %v177, 0
    %v181 = vadd.f32 %v175, %v179
    %v182 = vadd.f32 %v176, %v179
    %v183 = vmax.f32 %v181, 0.0
    %v184 = vmax.f32 %v182, 0.0
    %v185 = vrot.slane %v183, 7
    %v186 = vrot.slane %v184, 7
    %v187 = vsel %vm38, %v185, %v186
    %v188 = vsel %vm38, %v186, %v185
    %v189 = vmul.f32 %v188, %v44
    %v190 = vmul.f32 %v187, %v49
    %v191 = vrot.slane %v183, 1
    %v192 = vrot.slane %v184, 1
    %v193 = vsel %vm55, %v191, %v192
    %v194 = vsel %vm55, %v192, %v191
    %v195 = vmul.f32 %v193, %v61
    %v196 = vmul.f32 %v194, %v66
    %v197 = vpack.c.bf16 %v190, %v189
    %v198 = vld [vmem:[%s5] sm:$0xf]
    %v199 = vld [vmem:[%s5 + $0x4] sm:$0xf]
    %v200 = vld [vmem:[%s5 + $0x8] sm:$0xf]
    %v201 = vld [vmem:[%s5 + $0xc] sm:$0xf]
    %v202 = vld [vmem:[%s5 + $0x10] sm:$0xf]
    %v203 = vld [vmem:[%s5 + $0x14] sm:$0xf]
    %v204 = vld [vmem:[%s5 + $0x18] sm:$0xf]
    %v205 = vld [vmem:[%s5 + $0x1c] sm:$0xf]
    %v206 = vpack.c.bf16 %v184, %v183
    %s207 = scalar_lea.vmem %s5, 32
    %v208 = vld [vmem:[%s207] sm:$0xf]
    %v209 = vld [vmem:[%s207 + $0x4] sm:$0xf]
    %v210 = vld [vmem:[%s207 + $0x8] sm:$0xf]
    %v211 = vld [vmem:[%s207 + $0xc] sm:$0xf]
    %v212 = vld [vmem:[%s207 + $0x10] sm:$0xf]
    %v213 = vld [vmem:[%s207 + $0x14] sm:$0xf]
    %v214 = vld [vmem:[%s207 + $0x18] sm:$0xf]
    %v215 = vld [vmem:[%s207 + $0x1c] sm:$0xf]
    %v224 = vunpack.c.l.b16 %v208
    %v225 = vunpack.c.l.b16 %v209
    %v226 = vunpack.c.l.b16 %v210
    %v227 = vunpack.c.l.b16 %v211
    %v228 = vunpack.c.l.b16 %v212
    %v229 = vunpack.c.l.b16 %v213
    %v230 = vunpack.c.l.b16 %v214
    %v231 = vunpack.c.l.b16 %v215
    %v232 = vpack.c.b16 %v225, %v224
    %v233 = vpack.c.b16 %v227, %v226
    %v234 = vpack.c.b16 %v229, %v228
    %v235 = vpack.c.b16 %v231, %v230
    %vm240 = vcmask 523264
    %v242 = vsel %vm240, %v206, 0
    %244 = vmatpush.bf16.msra.mxu0 0
    %245 = vmatpush.bf16.msra.mxu0 0
    %246 = vmatpush.bf16.msra.mxu0 0
    %247 = vmatpush.bf16.msra.mxu0 0
    %248 = vmatpush.bf16.msra.mxu0 %v235
    %249 = vmatpush.bf16.msra.mxu0 %v234
    %250 = vmatpush.bf16.msra.mxu0 %v233
    %251 = vmatpush.bf16.msra.mxu0 %v232
    %252 = vmatmul.bf16.gmra.mxu0 %v242
    %v253 = vpop.f32.mrf.mxu0
    %v254 = vadd.f32 0.0, %v253
    %v255 = vpop.f32.mrf.mxu0
    %v256 = vadd.f32 0.0, %v255
    %257 = vdwg.mxu0
    %v266 = vunpack.c.l.b16 %v198
    %v267 = vunpack.c.l.b16 %v199
    %v268 = vunpack.c.l.b16 %v200
    %v269 = vunpack.c.l.b16 %v201
    %v270 = vunpack.c.l.b16 %v202
    %v271 = vunpack.c.l.b16 %v203
    %v272 = vunpack.c.l.b16 %v204
    %v273 = vunpack.c.l.b16 %v205
    %v274 = vpack.c.b16 %v267, %v266
    %v275 = vpack.c.b16 %v269, %v268
    %v276 = vpack.c.b16 %v271, %v270
    %v277 = vpack.c.b16 %v273, %v272
    %v283 = vsel %vm240, %v197, 0
    %285 = vmatpush.bf16.msra.mxu0 0
    %286 = vmatpush.bf16.msra.mxu0 0
    %287 = vmatpush.bf16.msra.mxu0 0
    %288 = vmatpush.bf16.msra.mxu0 0
    %289 = vmatpush.bf16.msra.mxu0 %v277
    %290 = vmatpush.bf16.msra.mxu0 %v276
    %291 = vmatpush.bf16.msra.mxu0 %v275
    %292 = vmatpush.bf16.msra.mxu0 %v274
    %293 = vmatmul.bf16.gmra.mxu0 %v283
    %v294 = vpop.f32.mrf.mxu0
    %v295 = vadd.f32 %v254, %v294
    %v296 = vpop.f32.mrf.mxu0
    %v297 = vadd.f32 %v256, %v296
    %298 = vdwg.mxu0
    %v299 = vpack.c.bf16 %v196, %v195
    %s300 = scalar_lea.vmem %s5, 64
    %v301 = vld [vmem:[%s300] sm:$0xf]
    %v302 = vld [vmem:[%s300 + $0x4] sm:$0xf]
    %v303 = vld [vmem:[%s300 + $0x8] sm:$0xf]
    %v304 = vld [vmem:[%s300 + $0xc] sm:$0xf]
    %v305 = vld [vmem:[%s300 + $0x10] sm:$0xf]
    %v306 = vld [vmem:[%s300 + $0x14] sm:$0xf]
    %v307 = vld [vmem:[%s300 + $0x18] sm:$0xf]
    %v308 = vld [vmem:[%s300 + $0x1c] sm:$0xf]
    %v317 = vunpack.c.l.b16 %v301
    %v318 = vunpack.c.l.b16 %v302
    %v319 = vunpack.c.l.b16 %v303
    %v320 = vunpack.c.l.b16 %v304
    %v321 = vunpack.c.l.b16 %v305
    %v322 = vunpack.c.l.b16 %v306
    %v323 = vunpack.c.l.b16 %v307
    %v324 = vunpack.c.l.b16 %v308
    %v325 = vpack.c.b16 %v318, %v317
    %v326 = vpack.c.b16 %v320, %v319
    %v327 = vpack.c.b16 %v322, %v321
    %v328 = vpack.c.b16 %v324, %v323
    %v334 = vsel %vm240, %v299, 0
    %336 = vmatpush.bf16.msra.mxu0 0
    %337 = vmatpush.bf16.msra.mxu0 0
    %338 = vmatpush.bf16.msra.mxu0 0
    %339 = vmatpush.bf16.msra.mxu0 0
    %340 = vmatpush.bf16.msra.mxu0 %v328
    %341 = vmatpush.bf16.msra.mxu0 %v327
    %342 = vmatpush.bf16.msra.mxu0 %v326
    %343 = vmatpush.bf16.msra.mxu0 %v325
    %344 = vmatmul.bf16.gmra.mxu0 %v334
    %v345 = vpop.f32.mrf.mxu0
    %v346 = vadd.f32 0.0, %v345
    %v347 = vpop.f32.mrf.mxu0
    %v348 = vadd.f32 0.0, %v347
    %349 = vdwg.mxu0
    %v350 = vadd.f32 %v295, %v346
    %v351 = vadd.f32 %v297, %v348
    %v352 = vld [vmem:[%s6] sm:$0x1]
    %v354 = vperm.slane %v352, 0
    %v356 = vadd.f32 %v350, %v354
    %v357 = vadd.f32 %v351, %v354
    %v358 = vmax.f32 %v356, 0.0
    %v359 = vmax.f32 %v357, 0.0
    %360 = vst.msk [vmem:[#allocation2] sm:$0xff] %vm93, %v358
    %361 = vst.msk [vmem:[#allocation2 + $0x8] sm:$0xff] %vm93, %v359
    // Predicated region
    $region30: #{tpu_custom_call.1} parent=1 // pred_check
      _
    $region31: #{tpu_custom_call.1} parent=1 // pred_check_branch
      %363 = sbr.rel (0) target = $region33
    $region32: #{tpu_custom_call.1} parent=1 // pred_region
      %365 = vsyncadd [#allocation3], 0
      %s366 = sshll.u32 [#allocation2], 4
      %s367 = int_to_ptr.vmem [resolvable:$true] %s366
      %s368 = sshll.u32 %s7, 4
      %s369 = int_to_ptr.hbm [resolvable:$true] %s368
      %374 = dma.vmem_to_hbm [thread:$0]  %s367, 256, %s369, [#allocation3], 128, 128, 8
    $region33: #{tpu_custom_call.1} parent=1 // pred_fallthru
      _
    // Predicated region
    $region34: #{tpu_custom_call.1} parent=1 // pred_check
      _
    $region35: #{tpu_custom_call.1} parent=1 // pred_check_branch
      %376 = sbr.rel (0) target = $region37
    $region36: #{tpu_custom_call.1} parent=1 // pred_region
      %378 = dma.done [#allocation3], 256
    $region37: #{tpu_custom_call.1} parent=1 // pred_fallthru
      _
    %379 = vsyncpa [#allocation3], 1

</llo_original>
